<compile_context>
chip_gen: v7x
topology: tpu7x:2x2x1
jax: 0.10.0
libtpu: 0.0.40
codegen_flags: <defaults>
</compile_context>

<pallas_src>
import jax
import jax.numpy as jnp
from jax.experimental import pallas as pl
from jax.experimental.pallas import tpu as pltpu

LANES = 128


def _round_up(a: int, b: int) -> int:
    return ((a + b - 1) // b) * b


def _ffnn_kernel(w1b_ref, w2b_ref, x_ref, o_ref):
    # w1b_ref: (128, 32*hidden)        f32 VMEM, block-diag kron(I_32, W1), resident
    # w2b_ref: (32*hidden, 32)         f32 VMEM, block-diag kron(I_32, W2), resident
    # x_ref  : (tile_rows, 128)        f32 VMEM, 32 samples x 4 features per row
    # o_ref  : (tile_rows, 32)         f32 VMEM, 32 sample outputs per row
    x = x_ref[...]
    h = jnp.tanh(
        jnp.dot(x, w1b_ref[...],
                preferred_element_type=jnp.float32,
                precision=jax.lax.Precision.HIGHEST))
    o = jnp.tanh(
        jnp.dot(h, w2b_ref[...],
                preferred_element_type=jnp.float32,
                precision=jax.lax.Precision.HIGHEST))
    o_ref[...] = o.astype(o_ref.dtype)


def ffnn_forward(x, w1, w2, *, tile_b_max: int = 262144):
    """Forward pass: sigmoid(sigmoid(X @ W1) @ W2), sigmoid == tanh.

    x : (N, in_features) f32   (batch-major, as the module provides it)
    w1: (in_features, hidden) f32
    w2: (hidden, 1) f32
    returns (N, 1) f32
    """
    n, in_features = x.shape
    in_f2, hidden = w1.shape
    assert in_features == in_f2, "W1 shape mismatch"
    assert w2.shape[0] == hidden, "W2 shape mismatch"
    out_features = w2.shape[1]
    assert out_features == 1, "module has outputSize == 1"
    assert LANES % in_features == 0, "in_features must divide 128"

    spr = LANES // in_features      # samples packed per 128-lane row (32)
    align = 8 * spr                 # 256 samples -> 8 full sublane rows

    x = x.astype(jnp.float32)
    w1 = w1.astype(jnp.float32)
    w2 = w2.astype(jnp.float32)

    # Tiny block-diagonal packed weights (built once per call, ~80 KB total).
    eye = jnp.eye(spr, dtype=jnp.float32)
    w1b = jnp.kron(eye, w1)         # (128, spr*hidden)
    w2b = jnp.kron(eye, w2)         # (spr*hidden, spr*out_features)

    # --- batch tiling: large per-step tiles, >= 4 grid steps when possible ---
    tile_b_max = max(align, (tile_b_max // align) * align)
    n_al = _round_up(n, align)
    num_steps = max(1, pl.cdiv(n_al, tile_b_max))
    if n_al >= 4 * align:
        num_steps = max(num_steps, 4)          # megacore sharding + pipelining
    tile_b = _round_up(pl.cdiv(n_al, num_steps), align)
    n_pad = num_steps * tile_b
    tile_rows = tile_b // spr                  # multiple of 8

    if n_pad != n:
        # only touched when N isn't already tile-aligned; tanh(0)=0 and the
        # padded samples are sliced off below.
        x = jnp.pad(x, ((0, n_pad - n), (0, 0)))
    x2d = x.reshape(n_pad // spr, LANES)       # free row-major re-label

    out2d = pl.pallas_call(
        _ffnn_kernel,
        out_shape=jax.ShapeDtypeStruct(
            (n_pad // spr, spr * out_features), jnp.float32),
        grid=(num_steps,),
        in_specs=[
            # small packed weights: constant block index -> fetched once, resident
            pl.BlockSpec((LANES, spr * hidden), lambda i: (0, 0)),
            pl.BlockSpec((spr * hidden, spr * out_features), lambda i: (0, 0)),
            # X streamed one dense batch tile per grid step
            pl.BlockSpec((tile_rows, LANES), lambda i: (i, 0)),
        ],
        out_specs=pl.BlockSpec((tile_rows, spr * out_features), lambda i: (i, 0)),
        compiler_params=pltpu.CompilerParams(
            dimension_semantics=("parallel",),
            vmem_limit_bytes=32 * 1024 * 1024,
        ),
    )(w1b, w2b, x2d)

    out_flat = out2d.reshape(n_pad * out_features)   # free (row-major == sample order)
    if n_pad != n:
        out_flat = out_flat[:n]                      # single slice only when padded
    return out_flat.reshape(n, out_features)         # free


def _sigmoid_ref(s):
    # exact transcription of the PyTorch helper (algebraically tanh)
    return (jnp.exp(s) - jnp.exp(-s)) / (jnp.exp(s) + jnp.exp(-s))


def ffnn_reference(x, w1, w2):
    z2 = _sigmoid_ref(x @ w1)
    return _sigmoid_ref(z2 @ w2)


# TODO(synk): backward()/train() (manual gradient updates), save/load_weights
# (torch.save/load file I/O) and predict()'s printing are host-side / training
# logic with no forward-pass Pallas equivalent; only forward() is implemented.

if __name__ == "__main__":
    key = jax.random.PRNGKey(0)
    k_x, k_w1, k_w2, k_x2 = jax.random.split(key, 4)

    batch = 8
    in_size, hidden_size, out_size = 4, 4, 1

    # deterministic "torch.randn"-style parameter init
    W1 = jax.random.normal(k_w1, (in_size, hidden_size), dtype=jnp.float32)
    W2 = jax.random.normal(k_w2, (hidden_size, out_size), dtype=jnp.float32)

    # inputs, normalized like the script does (X = X / X_max)
    X = jax.random.uniform(k_x, (batch, in_size), dtype=jnp.float32) * 100.0
    X = X / jnp.max(X)

    out = jax.block_until_ready(ffnn_forward(X, W1, W2))
    ref = ffnn_reference(X, W1, W2)
    assert out.shape == (batch, out_size)
    assert jnp.allclose(out, ref, atol=1e-4, rtol=1e-4)

    # second check: exercise the multi-step grid + batch-padding path
    X2 = jax.random.uniform(k_x2, (1000, in_size), dtype=jnp.float32) * 100.0
    X2 = X2 / jnp.max(X2)
    out2 = jax.block_until_ready(ffnn_forward(X2, W1, W2))
    ref2 = ffnn_reference(X2, W1, W2)
    assert out2.shape == (1000, out_size)
    assert jnp.allclose(out2, ref2, atol=1e-4, rtol=1e-4)

    print("KERNEL_OK")
</pallas_src>

<mosaic_0001>
module attributes {stable_mosaic.version = 11 : i64} {
  func.func @_ffnn_kernel(%arg0: i32, %arg1: memref<128x128xf32, #tpu.memory_space<vmem>>, %arg2: memref<128x32xf32, #tpu.memory_space<vmem>>, %arg3: memref<8x128xf32, #tpu.memory_space<vmem>>, %arg4: memref<8x32xf32, #tpu.memory_space<vmem>>) attributes {dimension_semantics = [#tpu.dimension_semantics<parallel>], iteration_bounds = array<i64: 1>, scalar_prefetch = 0 : i64, scratch_operands = 0 : i64, tpu.core_type = #tpu.core_type<tc>, window_params = [{pipeline_mode = #tpu.pipeline_mode<synchronous>, transform_indices = @transform_0, window_bounds = array<i64: 128, 128>}, {pipeline_mode = #tpu.pipeline_mode<synchronous>, transform_indices = @transform_1, window_bounds = array<i64: 128, 32>}, {transform_indices = @transform_2, window_bounds = array<i64: 8, 128>}, {transform_indices = @transform_3, window_bounds = array<i64: 8, 32>}]} {
    %c0 = arith.constant 0 : index
    %c0_0 = arith.constant 0 : index
    %0 = vector.load %arg3[%c0, %c0_0] : memref<8x128xf32, #tpu.memory_space<vmem>>, vector<8x128xf32>
    %c0_1 = arith.constant 0 : index
    %c0_2 = arith.constant 0 : index
    %1 = vector.load %arg1[%c0_1, %c0_2] : memref<128x128xf32, #tpu.memory_space<vmem>>, vector<128x128xf32>
    %cst = arith.constant dense<0.000000e+00> : vector<8x128xf32>
    %2 = tpu.matmul %0, %1, %cst {dimension_numbers = #tpu.dot_dimension_numbers<[1], [0], [0], [1], [0, 0, 1, 1], [], []>, precision = #tpu.contract_precision<fp32>} : vector<8x128xf32>, vector<128x128xf32>, vector<8x128xf32> -> vector<8x128xf32>
    %3 = math.tanh %2 : vector<8x128xf32>
    %c0_3 = arith.constant 0 : index
    %c0_4 = arith.constant 0 : index
    %4 = vector.load %arg2[%c0_3, %c0_4] : memref<128x32xf32, #tpu.memory_space<vmem>>, vector<128x32xf32>
    %cst_5 = arith.constant dense<0.000000e+00> : vector<8x32xf32>
    %5 = tpu.matmul %3, %4, %cst_5 {dimension_numbers = #tpu.dot_dimension_numbers<[1], [0], [0], [1], [0, 0, 1, 1], [], []>, precision = #tpu.contract_precision<fp32>} : vector<8x128xf32>, vector<128x32xf32>, vector<8x32xf32> -> vector<8x32xf32>
    %6 = math.tanh %5 : vector<8x32xf32>
    %c0_6 = arith.constant 0 : index
    %c0_7 = arith.constant 0 : index
    %7 = vector.load %arg4[%c0_6, %c0_7] : memref<8x32xf32, #tpu.memory_space<vmem>>, vector<8x32xf32>
    tpu.vector_store %arg4[%c0_6, %c0_7], %6 {strides = array<i32>} : memref<8x32xf32, #tpu.memory_space<vmem>>, vector<8x32xf32>,
    return
  }
  func.func @transform_0(%arg0: i32) -> (i32, i32) {
    %c0_i32 = arith.constant 0 : i32
    %c0_i32_0 = arith.constant 0 : i32
    %c0_i32_1 = arith.constant 0 : i32
    return %c0_i32, %c0_i32_0 : i32, i32
  }
  func.func @transform_1(%arg0: i32) -> (i32, i32) {
    %c0_i32 = arith.constant 0 : i32
    %c0_i32_0 = arith.constant 0 : i32
    %c0_i32_1 = arith.constant 0 : i32
    return %c0_i32, %c0_i32_0 : i32, i32
  }
  func.func @transform_2(%arg0: i32) -> (i32, i32) {
    %c0_i32 = arith.constant 0 : i32
    %c0_i32_0 = arith.constant 0 : i32
    return %arg0, %c0_i32 : i32, i32
  }
  func.func @transform_3(%arg0: i32) -> (i32, i32) {
    %c0_i32 = arith.constant 0 : i32
    %c0_i32_0 = arith.constant 0 : i32
    return %arg0, %c0_i32 : i32, i32
  }
}

</mosaic_0001>

<llo_original>
// kernel: tpu_custom_call.1
$region0: #{tpu_custom_call.1}
  #allocation0 [shape = 'u32[]', space=smem, size = 0x4, offset = 0x4, fixed_abs, tag = 'smem constant byte address 0x4 - core index']
  #allocation1 [shape = 'u32[144,128]{1,0:T(1,128)}', space=vmem, size = 0x12000, scoped, tag = 'internal scratch']
  %s0 = inlined_call_operand.vmem [shape: f32[128,128], index: 0, kind: input, shape index: {}]
  %s1 = inlined_call_operand.vmem [shape: f32[128,32], index: 1, kind: input, shape index: {}]
  %s2 = inlined_call_operand.vmem [shape: f32[8,128], index: 2, kind: input, shape index: {}]
  %s3 = inlined_call_operand.hbm [shape: f32[8,32], index: 3, kind: output, shape index: {}]
  %s4 = sld [smem:[#allocation0]]
  $region22: #{tpu_custom_call.1} parent=0
    _
  %s6 = ssub.s32 1, %s4
  %s7 = scalar_select 0, %s6, %s4
  $region1: #{tpu_custom_call.1} parent=0
    #allocation2 [shape = 'u8[4096]{0}', space=vmem, size = 0x1000, scoped, tag = 'output window, operand 0, single buffered']
    #allocation3 [shape = 's32[1]{0}', space=sflag, size = 0x4, scoped, tag = 'scoped memory for tpu_custom_call.1']
    %8 = vsyncpa [#allocation3], 0
    // Predicated region
    $region2: #{tpu_custom_call.1} parent=1 // pred_check
      _
    $region3: #{tpu_custom_call.1} parent=1 // pred_check_branch
      %10 = sbr.rel (0) target = $region5
    $region4: #{tpu_custom_call.1} parent=1 // pred_region
      _
    $region5: #{tpu_custom_call.1} parent=1 // pred_fallthru
      _
    // Predicated region
    $region6: #{tpu_custom_call.1} parent=1 // pred_check
      _
    $region7: #{tpu_custom_call.1} parent=1 // pred_check_branch
      %12 = sbr.rel (0) target = $region9
    $region8: #{tpu_custom_call.1} parent=1 // pred_region
      _
    $region9: #{tpu_custom_call.1} parent=1 // pred_fallthru
      _
    // Predicated region
    $region10: #{tpu_custom_call.1} parent=1 // pred_check
      _
    $region11: #{tpu_custom_call.1} parent=1 // pred_check_branch
      %14 = sbr.rel (0) target = $region13
    $region12: #{tpu_custom_call.1} parent=1 // pred_region
      _
    $region13: #{tpu_custom_call.1} parent=1 // pred_fallthru
      _
    %v15 = vld [vmem:[%s2] sm:$0xff]
    %v16 = vld [vmem:[%s0] sm:$0xff]
    %v17 = vld [vmem:[%s0 + $0x8] sm:$0xff]
    %v18 = vld [vmem:[%s0 + $0x10] sm:$0xff]
    %v19 = vld [vmem:[%s0 + $0x18] sm:$0xff]
    %v20 = vld [vmem:[%s0 + $0x20] sm:$0xff]
    %v21 = vld [vmem:[%s0 + $0x28] sm:$0xff]
    %v22 = vld [vmem:[%s0 + $0x30] sm:$0xff]
    %v23 = vld [vmem:[%s0 + $0x38] sm:$0xff]
    %v24 = vld [vmem:[%s0 + $0x40] sm:$0xff]
    %v25 = vld [vmem:[%s0 + $0x48] sm:$0xff]
    %v26 = vld [vmem:[%s0 + $0x50] sm:$0xff]
    %v27 = vld [vmem:[%s0 + $0x58] sm:$0xff]
    %v28 = vld [vmem:[%s0 + $0x60] sm:$0xff]
    %v29 = vld [vmem:[%s0 + $0x68] sm:$0xff]
    %v30 = vld [vmem:[%s0 + $0x70] sm:$0xff]
    %v31 = vld [vmem:[%s0 + $0x78] sm:$0xff]
    %32 = vmatprep.subr.mxu0 0.0
    %v33 = vand.u32 %v16, 4294901760
    %34 = vmatpush1.msra.mxu0 %v33
    %35 = vmatprep.subr.mxu0 0.0
    %v36 = vand.u32 %v17, 4294901760
    %37 = vmatpush1.msra.mxu0 %v36
    %38 = vmatprep.subr.mxu0 0.0
    %v39 = vand.u32 %v18, 4294901760
    %40 = vmatpush1.msra.mxu0 %v39
    %41 = vmatprep.subr.mxu0 0.0
    %v42 = vand.u32 %v19, 4294901760
    %43 = vmatpush1.msra.mxu0 %v42
    %44 = vmatprep.subr.mxu0 0.0
    %v45 = vand.u32 %v20, 4294901760
    %46 = vmatpush1.msra.mxu0 %v45
    %47 = vmatprep.subr.mxu0 0.0
    %v48 = vand.u32 %v21, 4294901760
    %49 = vmatpush1.msra.mxu0 %v48
    %50 = vmatprep.subr.mxu0 0.0
    %v51 = vand.u32 %v22, 4294901760
    %52 = vmatpush1.msra.mxu0 %v51
    %53 = vmatprep.subr.mxu0 0.0
    %v54 = vand.u32 %v23, 4294901760
    %55 = vmatpush1.msra.mxu0 %v54
    %56 = vmatprep.subr.mxu0 0.0
    %v57 = vand.u32 %v24, 4294901760
    %58 = vmatpush1.msra.mxu0 %v57
    %59 = vmatprep.subr.mxu0 0.0
    %v60 = vand.u32 %v25, 4294901760
    %61 = vmatpush1.msra.mxu0 %v60
    %62 = vmatprep.subr.mxu0 0.0
    %v63 = vand.u32 %v26, 4294901760
    %64 = vmatpush1.msra.mxu0 %v63
    %65 = vmatprep.subr.mxu0 0.0
    %v66 = vand.u32 %v27, 4294901760
    %67 = vmatpush1.msra.mxu0 %v66
    %68 = vmatprep.subr.mxu0 0.0
    %v69 = vand.u32 %v28, 4294901760
    %70 = vmatpush1.msra.mxu0 %v69
    %71 = vmatprep.subr.mxu0 0.0
    %v72 = vand.u32 %v29, 4294901760
    %73 = vmatpush1.msra.mxu0 %v72
    %74 = vmatprep.subr.mxu0 0.0
    %v75 = vand.u32 %v30, 4294901760
    %76 = vmatpush1.msra.mxu0 %v75
    %77 = vmatprep.subr.mxu0 0.0
    %v78 = vand.u32 %v31, 4294901760
    %79 = vmatpush1.msra.mxu0 %v78
    %80 = vmatprep.subr.mxu0 0.0
    %81 = vmatpush1.msra.mxu0 0.0
    %82 = vmatprep.subr.mxu0 0.0
    %83 = vmatpush1.msra.mxu0 0.0
    %84 = vmatprep.subr.mxu0 0.0
    %85 = vmatpush1.msra.mxu0 0.0
    %86 = vmatprep.subr.mxu0 0.0
    %87 = vmatpush1.msra.mxu0 0.0
    %88 = vmatprep.subr.mxu0 0.0
    %89 = vmatpush1.msra.mxu0 0.0
    %90 = vmatprep.subr.mxu0 0.0
    %91 = vmatpush1.msra.mxu0 0.0
    %92 = vmatprep.subr.mxu0 0.0
    %93 = vmatpush1.msra.mxu0 0.0
    %94 = vmatprep.subr.mxu0 0.0
    %95 = vmatpush1.msra.mxu0 0.0
    %96 = vmatprep.subr.mxu0 0.0
    %97 = vmatpush1.msra.mxu0 0.0
    %98 = vmatprep.subr.mxu0 0.0
    %99 = vmatpush1.msra.mxu0 0.0
    %100 = vmatprep.subr.mxu0 0.0
    %101 = vmatpush1.msra.mxu0 0.0
    %102 = vmatprep.subr.mxu0 0.0
    %103 = vmatpush1.msra.mxu0 0.0
    %104 = vmatprep.subr.mxu0 0.0
    %105 = vmatpush1.msra.mxu0 0.0
    %106 = vmatprep.subr.mxu0 0.0
    %107 = vmatpush1.msra.mxu0 0.0
    %108 = vmatprep.subr.mxu0 0.0
    %109 = vmatpush1.msra.mxu0 0.0
    %110 = vmatprep.subr.mxu0 0.0
    %111 = vmatpush1.msra.mxu0 0.0
    %112 = vmatprep.mubr.f32.mxu0 0.0
    %v113 = vand.u32 %v15, 4294901760
    %v114 = vsub.f32 %v15, %v113
    %v115 = vand.u32 %v114, 4294901760
    %v116 = vsub.f32 %v114, %v115
    %v117 = vand.u32 %v116, 4294901760
    %118 = vmatmul.mubr.f32.gmra.mrb[0].mxu0 %v117
    %v119 = vpop.f32.mrb[0].mxu0
    %v120 = vadd.f32 0.0, %v119
    %v121 = vpop.f32.mrb[0].mxu0
    %122 = vdwg.mxu0
    %123 = vmatprep.subr.mxu0 0.0
    %v124 = vand.u32 %v16, 4294901760
    %v125 = vsub.f32 %v16, %v124
    %v126 = vand.u32 %v125, 4294901760
    %v127 = vsub.f32 %v125, %v126
    %v128 = vand.u32 %v127, 4294901760
    %129 = vmatpush1.msra.mxu0 %v128
    %130 = vmatprep.subr.mxu0 0.0
    %v131 = vand.u32 %v17, 4294901760
    %v132 = vsub.f32 %v17, %v131
    %v133 = vand.u32 %v132, 4294901760
    %v134 = vsub.f32 %v132, %v133
    %v135 = vand.u32 %v134, 4294901760
    %136 = vmatpush1.msra.mxu0 %v135
    %137 = vmatprep.subr.mxu0 0.0
    %v138 = vand.u32 %v18, 4294901760
    %v139 = vsub.f32 %v18, %v138
    %v140 = vand.u32 %v139, 4294901760
    %v141 = vsub.f32 %v139, %v140
    %v142 = vand.u32 %v141, 4294901760
    %143 = vmatpush1.msra.mxu0 %v142
    %144 = vmatprep.subr.mxu0 0.0
    %v145 = vand.u32 %v19, 4294901760
    %v146 = vsub.f32 %v19, %v145
    %v147 = vand.u32 %v146, 4294901760
    %v148 = vsub.f32 %v146, %v147
    %v149 = vand.u32 %v148, 4294901760
    %150 = vmatpush1.msra.mxu0 %v149
    %151 = vmatprep.subr.mxu0 0.0
    %v152 = vand.u32 %v20, 4294901760
    %v153 = vsub.f32 %v20, %v152
    %v154 = vand.u32 %v153, 4294901760
    %v155 = vsub.f32 %v153, %v154
    %v156 = vand.u32 %v155, 4294901760
    %157 = vmatpush1.msra.mxu0 %v156
    %158 = vmatprep.subr.mxu0 0.0
    %v159 = vand.u32 %v21, 4294901760
    %v160 = vsub.f32 %v21, %v159
    %v161 = vand.u32 %v160, 4294901760
    %v162 = vsub.f32 %v160, %v161
    %v163 = vand.u32 %v162, 4294901760
    %164 = vmatpush1.msra.mxu0 %v163
    %165 = vmatprep.subr.mxu0 0.0
    %v166 = vand.u32 %v22, 4294901760
    %v167 = vsub.f32 %v22, %v166
    %v168 = vand.u32 %v167, 4294901760
    %v169 = vsub.f32 %v167, %v168
    %v170 = vand.u32 %v169, 4294901760
    %171 = vmatpush1.msra.mxu0 %v170
    %172 = vmatprep.subr.mxu0 0.0
    %v173 = vand.u32 %v23, 4294901760
    %v174 = vsub.f32 %v23, %v173
    %v175 = vand.u32 %v174, 4294901760
    %v176 = vsub.f32 %v174, %v175
    %v177 = vand.u32 %v176, 4294901760
    %178 = vmatpush1.msra.mxu0 %v177
    %179 = vmatprep.subr.mxu0 0.0
    %v180 = vand.u32 %v24, 4294901760
    %v181 = vsub.f32 %v24, %v180
    %v182 = vand.u32 %v181, 4294901760
    %v183 = vsub.f32 %v181, %v182
    %v184 = vand.u32 %v183, 4294901760
    %185 = vmatpush1.msra.mxu0 %v184
    %186 = vmatprep.subr.mxu0 0.0
    %v187 = vand.u32 %v25, 4294901760
    %v188 = vsub.f32 %v25, %v187
    %v189 = vand.u32 %v188, 4294901760
    %v190 = vsub.f32 %v188, %v189
    %v191 = vand.u32 %v190, 4294901760
    %192 = vmatpush1.msra.mxu0 %v191
    %193 = vmatprep.subr.mxu0 0.0
    %v194 = vand.u32 %v26, 4294901760
    %v195 = vsub.f32 %v26, %v194
    %v196 = vand.u32 %v195, 4294901760
    %v197 = vsub.f32 %v195, %v196
    %v198 = vand.u32 %v197, 4294901760
    %199 = vmatpush1.msra.mxu0 %v198
    %200 = vmatprep.subr.mxu0 0.0
    %v201 = vand.u32 %v27, 4294901760
    %v202 = vsub.f32 %v27, %v201
    %v203 = vand.u32 %v202, 4294901760
    %v204 = vsub.f32 %v202, %v203
    %v205 = vand.u32 %v204, 4294901760
    %206 = vmatpush1.msra.mxu0 %v205
    %207 = vmatprep.subr.mxu0 0.0
    %v208 = vand.u32 %v28, 4294901760
    %v209 = vsub.f32 %v28, %v208
    %v210 = vand.u32 %v209, 4294901760
    %v211 = vsub.f32 %v209, %v210
    %v212 = vand.u32 %v211, 4294901760
    %213 = vmatpush1.msra.mxu0 %v212
    %214 = vmatprep.subr.mxu0 0.0
    %v215 = vand.u32 %v29, 4294901760
    %v216 = vsub.f32 %v29, %v215
    %v217 = vand.u32 %v216, 4294901760
    %v218 = vsub.f32 %v216, %v217
    %v219 = vand.u32 %v218, 4294901760
    %220 = vmatpush1.msra.mxu0 %v219
    %221 = vmatprep.subr.mxu0 0.0
    %v222 = vand.u32 %v30, 4294901760
    %v223 = vsub.f32 %v30, %v222
    %v224 = vand.u32 %v223, 4294901760
    %v225 = vsub.f32 %v223, %v224
    %v226 = vand.u32 %v225, 4294901760
    %227 = vmatpush1.msra.mxu0 %v226
    %228 = vmatprep.subr.mxu0 0.0
    %v229 = vand.u32 %v31, 4294901760
    %v230 = vsub.f32 %v31, %v229
    %v231 = vand.u32 %v230, 4294901760
    %v232 = vsub.f32 %v230, %v231
    %v233 = vand.u32 %v232, 4294901760
    %234 = vmatpush1.msra.mxu0 %v233
    %235 = vmatprep.subr.mxu0 0.0
    %236 = vmatpush1.msra.mxu0 0.0
    %237 = vmatprep.subr.mxu0 0.0
    %238 = vmatpush1.msra.mxu0 0.0
    %239 = vmatprep.subr.mxu0 0.0
    %240 = vmatpush1.msra.mxu0 0.0
    %241 = vmatprep.subr.mxu0 0.0
    %242 = vmatpush1.msra.mxu0 0.0
    %243 = vmatprep.subr.mxu0 0.0
    %244 = vmatpush1.msra.mxu0 0.0
    %245 = vmatprep.subr.mxu0 0.0
    %246 = vmatpush1.msra.mxu0 0.0
    %247 = vmatprep.subr.mxu0 0.0
    %248 = vmatpush1.msra.mxu0 0.0
    %249 = vmatprep.subr.mxu0 0.0
    %250 = vmatpush1.msra.mxu0 0.0
    %251 = vmatprep.subr.mxu0 0.0
    %252 = vmatpush1.msra.mxu0 0.0
    %253 = vmatprep.subr.mxu0 0.0
    %254 = vmatpush1.msra.mxu0 0.0
    %255 = vmatprep.subr.mxu0 0.0
    %256 = vmatpush1.msra.mxu0 0.0
    %257 = vmatprep.subr.mxu0 0.0
    %258 = vmatpush1.msra.mxu0 0.0
    %259 = vmatprep.subr.mxu0 0.0
    %260 = vmatpush1.msra.mxu0 0.0
    %261 = vmatprep.subr.mxu0 0.0
    %262 = vmatpush1.msra.mxu0 0.0
    %263 = vmatprep.subr.mxu0 0.0
    %264 = vmatpush1.msra.mxu0 0.0
    %265 = vmatprep.subr.mxu0 0.0
    %266 = vmatpush1.msra.mxu0 0.0
    %267 = vmatprep.mubr.f32.mxu0 0.0
    %v268 = vand.u32 %v15, 4294901760
    %269 = vmatmul.mubr.f32.gmra.mrb[0].mxu0 %v268
    %v270 = vpop.f32.mrb[0].mxu0
    %v271 = vadd.f32 %v120, %v270
    %v272 = vpop.f32.mrb[0].mxu0
    %273 = vdwg.mxu0
    %274 = vmatprep.subr.mxu0 0.0
    %v275 = vand.u32 %v16, 4294901760
    %v276 = vsub.f32 %v16, %v275
    %277 = vmatpush1.msra.mxu0 %v276
    %278 = vmatprep.subr.mxu0 0.0
    %v279 = vand.u32 %v17, 4294901760
    %v280 = vsub.f32 %v17, %v279
    %281 = vmatpush1.msra.mxu0 %v280
    %282 = vmatprep.subr.mxu0 0.0
    %v283 = vand.u32 %v18, 4294901760
    %v284 = vsub.f32 %v18, %v283
    %285 = vmatpush1.msra.mxu0 %v284
    %286 = vmatprep.subr.mxu0 0.0
    %v287 = vand.u32 %v19, 4294901760
    %v288 = vsub.f32 %v19, %v287
    %289 = vmatpush1.msra.mxu0 %v288
    %290 = vmatprep.subr.mxu0 0.0
    %v291 = vand.u32 %v20, 4294901760
    %v292 = vsub.f32 %v20, %v291
    %293 = vmatpush1.msra.mxu0 %v292
    %294 = vmatprep.subr.mxu0 0.0
    %v295 = vand.u32 %v21, 4294901760
    %v296 = vsub.f32 %v21, %v295
    %297 = vmatpush1.msra.mxu0 %v296
    %298 = vmatprep.subr.mxu0 0.0
    %v299 = vand.u32 %v22, 4294901760
    %v300 = vsub.f32 %v22, %v299
    %301 = vmatpush1.msra.mxu0 %v300
    %302 = vmatprep.subr.mxu0 0.0
    %v303 = vand.u32 %v23, 4294901760
    %v304 = vsub.f32 %v23, %v303
    %305 = vmatpush1.msra.mxu0 %v304
    %306 = vmatprep.subr.mxu0 0.0
    %v307 = vand.u32 %v24, 4294901760
    %v308 = vsub.f32 %v24, %v307
    %309 = vmatpush1.msra.mxu0 %v308
    %310 = vmatprep.subr.mxu0 0.0
    %v311 = vand.u32 %v25, 4294901760
    %v312 = vsub.f32 %v25, %v311
    %313 = vmatpush1.msra.mxu0 %v312
    %314 = vmatprep.subr.mxu0 0.0
    %v315 = vand.u32 %v26, 4294901760
    %v316 = vsub.f32 %v26, %v315
    %317 = vmatpush1.msra.mxu0 %v316
    %318 = vmatprep.subr.mxu0 0.0
    %v319 = vand.u32 %v27, 4294901760
    %v320 = vsub.f32 %v27, %v319
    %321 = vmatpush1.msra.mxu0 %v320
    %322 = vmatprep.subr.mxu0 0.0
    %v323 = vand.u32 %v28, 4294901760
    %v324 = vsub.f32 %v28, %v323
    %325 = vmatpush1.msra.mxu0 %v324
    %326 = vmatprep.subr.mxu0 0.0
    %v327 = vand.u32 %v29, 4294901760
    %v328 = vsub.f32 %v29, %v327
    %329 = vmatpush1.msra.mxu0 %v328
    %330 = vmatprep.subr.mxu0 0.0
    %v331 = vand.u32 %v30, 4294901760
    %v332 = vsub.f32 %v30, %v331
    %333 = vmatpush1.msra.mxu0 %v332
    %334 = vmatprep.subr.mxu0 0.0
    %v335 = vand.u32 %v31, 4294901760
    %v336 = vsub.f32 %v31, %v335
    %337 = vmatpush1.msra.mxu0 %v336
    %338 = vmatprep.subr.mxu0 0.0
    %339 = vmatpush1.msra.mxu0 0.0
    %340 = vmatprep.subr.mxu0 0.0
    %341 = vmatpush1.msra.mxu0 0.0
    %342 = vmatprep.subr.mxu0 0.0
    %343 = vmatpush1.msra.mxu0 0.0
    %344 = vmatprep.subr.mxu0 0.0
    %345 = vmatpush1.msra.mxu0 0.0
    %346 = vmatprep.subr.mxu0 0.0
    %347 = vmatpush1.msra.mxu0 0.0
    %348 = vmatprep.subr.mxu0 0.0
    %349 = vmatpush1.msra.mxu0 0.0
    %350 = vmatprep.subr.mxu0 0.0
    %351 = vmatpush1.msra.mxu0 0.0
    %352 = vmatprep.subr.mxu0 0.0
    %353 = vmatpush1.msra.mxu0 0.0
    %354 = vmatprep.subr.mxu0 0.0
    %355 = vmatpush1.msra.mxu0 0.0
    %356 = vmatprep.subr.mxu0 0.0
    %357 = vmatpush1.msra.mxu0 0.0
    %358 = vmatprep.subr.mxu0 0.0
    %359 = vmatpush1.msra.mxu0 0.0
    %360 = vmatprep.subr.mxu0 0.0
    %361 = vmatpush1.msra.mxu0 0.0
    %362 = vmatprep.subr.mxu0 0.0
    %363 = vmatpush1.msra.mxu0 0.0
    %364 = vmatprep.subr.mxu0 0.0
    %365 = vmatpush1.msra.mxu0 0.0
    %366 = vmatprep.subr.mxu0 0.0
    %367 = vmatpush1.msra.mxu0 0.0
    %368 = vmatprep.subr.mxu0 0.0
    %369 = vmatpush1.msra.mxu0 0.0
    %370 = vmatprep.mubr.f32.mxu0 0.0
    %v371 = vand.u32 %v15, 4294901760
    %v372 = vsub.f32 %v15, %v371
    %373 = vmatmul.mubr.f32.gmra.mrb[0].mxu0 %v372
    %v374 = vpop.f32.mrb[0].mxu0
    %v375 = vadd.f32 %v271, %v374
    %v376 = vpop.f32.mrb[0].mxu0
    %377 = vdwg.mxu0
    %378 = vmatprep.subr.mxu0 0.0
    %v379 = vand.u32 %v16, 4294901760
    %380 = vmatpush1.msra.mxu0 %v379
    %381 = vmatprep.subr.mxu0 0.0
    %v382 = vand.u32 %v17, 4294901760
    %383 = vmatpush1.msra.mxu0 %v382
    %384 = vmatprep.subr.mxu0 0.0
    %v385 = vand.u32 %v18, 4294901760
    %386 = vmatpush1.msra.mxu0 %v385
    %387 = vmatprep.subr.mxu0 0.0
    %v388 = vand.u32 %v19, 4294901760
    %389 = vmatpush1.msra.mxu0 %v388
    %390 = vmatprep.subr.mxu0 0.0
    %v391 = vand.u32 %v20, 4294901760
    %392 = vmatpush1.msra.mxu0 %v391
    %393 = vmatprep.subr.mxu0 0.0
    %v394 = vand.u32 %v21, 4294901760
    %395 = vmatpush1.msra.mxu0 %v394
    %396 = vmatprep.subr.mxu0 0.0
    %v397 = vand.u32 %v22, 4294901760
    %398 = vmatpush1.msra.mxu0 %v397
    %399 = vmatprep.subr.mxu0 0.0
    %v400 = vand.u32 %v23, 4294901760
    %401 = vmatpush1.msra.mxu0 %v400
    %402 = vmatprep.subr.mxu0 0.0
    %v403 = vand.u32 %v24, 4294901760
    %404 = vmatpush1.msra.mxu0 %v403
    %405 = vmatprep.subr.mxu0 0.0
    %v406 = vand.u32 %v25, 4294901760
    %407 = vmatpush1.msra.mxu0 %v406
    %408 = vmatprep.subr.mxu0 0.0
    %v409 = vand.u32 %v26, 4294901760
    %410 = vmatpush1.msra.mxu0 %v409
    %411 = vmatprep.subr.mxu0 0.0
    %v412 = vand.u32 %v27, 4294901760
    %413 = vmatpush1.msra.mxu0 %v412
    %414 = vmatprep.subr.mxu0 0.0
    %v415 = vand.u32 %v28, 4294901760
    %416 = vmatpush1.msra.mxu0 %v415
    %417 = vmatprep.subr.mxu0 0.0
    %v418 = vand.u32 %v29, 4294901760
    %419 = vmatpush1.msra.mxu0 %v418
    %420 = vmatprep.subr.mxu0 0.0
    %v421 = vand.u32 %v30, 4294901760
    %422 = vmatpush1.msra.mxu0 %v421
    %423 = vmatprep.subr.mxu0 0.0
    %v424 = vand.u32 %v31, 4294901760
    %425 = vmatpush1.msra.mxu0 %v424
    %426 = vmatprep.subr.mxu0 0.0
    %427 = vmatpush1.msra.mxu0 0.0
    %428 = vmatprep.subr.mxu0 0.0
    %429 = vmatpush1.msra.mxu0 0.0
    %430 = vmatprep.subr.mxu0 0.0
    %431 = vmatpush1.msra.mxu0 0.0
    %432 = vmatprep.subr.mxu0 0.0
    %433 = vmatpush1.msra.mxu0 0.0
    %434 = vmatprep.subr.mxu0 0.0
    %435 = vmatpush1.msra.mxu0 0.0
    %436 = vmatprep.subr.mxu0 0.0
    %437 = vmatpush1.msra.mxu0 0.0
    %438 = vmatprep.subr.mxu0 0.0
    %439 = vmatpush1.msra.mxu0 0.0
    %440 = vmatprep.subr.mxu0 0.0
    %441 = vmatpush1.msra.mxu0 0.0
    %442 = vmatprep.subr.mxu0 0.0
    %443 = vmatpush1.msra.mxu0 0.0
    %444 = vmatprep.subr.mxu0 0.0
    %445 = vmatpush1.msra.mxu0 0.0
    %446 = vmatprep.subr.mxu0 0.0
    %447 = vmatpush1.msra.mxu0 0.0
    %448 = vmatprep.subr.mxu0 0.0
    %449 = vmatpush1.msra.mxu0 0.0
    %450 = vmatprep.subr.mxu0 0.0
    %451 = vmatpush1.msra.mxu0 0.0
    %452 = vmatprep.subr.mxu0 0.0
    %453 = vmatpush1.msra.mxu0 0.0
    %454 = vmatprep.subr.mxu0 0.0
    %455 = vmatpush1.msra.mxu0 0.0
    %456 = vmatprep.subr.mxu0 0.0
    %457 = vmatpush1.msra.mxu0 0.0
    %458 = vmatprep.mubr.f32.mxu0 0.0
    %v459 = vand.u32 %v15, 4294901760
    %v460 = vsub.f32 %v15, %v459
    %v461 = vand.u32 %v460, 4294901760
    %462 = vmatmul.mubr.f32.gmra.mrb[0].mxu0 %v461
    %v463 = vpop.f32.mrb[0].mxu0
    %v464 = vadd.f32 %v375, %v463
    %v465 = vpop.f32.mrb[0].mxu0
    %466 = vdwg.mxu0
    %467 = vmatprep.subr.mxu0 0.0
    %v468 = vand.u32 %v16, 4294901760
    %v469 = vsub.f32 %v16, %v468
    %v470 = vand.u32 %v469, 4294901760
    %471 = vmatpush1.msra.mxu0 %v470
    %472 = vmatprep.subr.mxu0 0.0
    %v473 = vand.u32 %v17, 4294901760
    %v474 = vsub.f32 %v17, %v473
    %v475 = vand.u32 %v474, 4294901760
    %476 = vmatpush1.msra.mxu0 %v475
    %477 = vmatprep.subr.mxu0 0.0
    %v478 = vand.u32 %v18, 4294901760
    %v479 = vsub.f32 %v18, %v478
    %v480 = vand.u32 %v479, 4294901760
    %481 = vmatpush1.msra.mxu0 %v480
    %482 = vmatprep.subr.mxu0 0.0
    %v483 = vand.u32 %v19, 4294901760
    %v484 = vsub.f32 %v19, %v483
    %v485 = vand.u32 %v484, 4294901760
    %486 = vmatpush1.msra.mxu0 %v485
    %487 = vmatprep.subr.mxu0 0.0
    %v488 = vand.u32 %v20, 4294901760
    %v489 = vsub.f32 %v20, %v488
    %v490 = vand.u32 %v489, 4294901760
    %491 = vmatpush1.msra.mxu0 %v490
    %492 = vmatprep.subr.mxu0 0.0
    %v493 = vand.u32 %v21, 4294901760
    %v494 = vsub.f32 %v21, %v493
    %v495 = vand.u32 %v494, 4294901760
    %496 = vmatpush1.msra.mxu0 %v495
    %497 = vmatprep.subr.mxu0 0.0
    %v498 = vand.u32 %v22, 4294901760
    %v499 = vsub.f32 %v22, %v498
    %v500 = vand.u32 %v499, 4294901760
    %501 = vmatpush1.msra.mxu0 %v500
    %502 = vmatprep.subr.mxu0 0.0
    %v503 = vand.u32 %v23, 4294901760
    %v504 = vsub.f32 %v23, %v503
    %v505 = vand.u32 %v504, 4294901760
    %506 = vmatpush1.msra.mxu0 %v505
    %507 = vmatprep.subr.mxu0 0.0
    %v508 = vand.u32 %v24, 4294901760
    %v509 = vsub.f32 %v24, %v508
    %v510 = vand.u32 %v509, 4294901760
    %511 = vmatpush1.msra.mxu0 %v510
    %512 = vmatprep.subr.mxu0 0.0
    %v513 = vand.u32 %v25, 4294901760
    %v514 = vsub.f32 %v25, %v513
    %v515 = vand.u32 %v514, 4294901760
    %516 = vmatpush1.msra.mxu0 %v515
    %517 = vmatprep.subr.mxu0 0.0
    %v518 = vand.u32 %v26, 4294901760
    %v519 = vsub.f32 %v26, %v518
    %v520 = vand.u32 %v519, 4294901760
    %521 = vmatpush1.msra.mxu0 %v520
    %522 = vmatprep.subr.mxu0 0.0
    %v523 = vand.u32 %v27, 4294901760
    %v524 = vsub.f32 %v27, %v523
    %v525 = vand.u32 %v524, 4294901760
    %526 = vmatpush1.msra.mxu0 %v525
    %527 = vmatprep.subr.mxu0 0.0
    %v528 = vand.u32 %v28, 4294901760
    %v529 = vsub.f32 %v28, %v528
    %v530 = vand.u32 %v529, 4294901760
    %531 = vmatpush1.msra.mxu0 %v530
    %532 = vmatprep.subr.mxu0 0.0
    %v533 = vand.u32 %v29, 4294901760
    %v534 = vsub.f32 %v29, %v533
    %v535 = vand.u32 %v534, 4294901760
    %536 = vmatpush1.msra.mxu0 %v535
    %537 = vmatprep.subr.mxu0 0.0
    %v538 = vand.u32 %v30, 4294901760
    %v539 = vsub.f32 %v30, %v538
    %v540 = vand.u32 %v539, 4294901760
    %541 = vmatpush1.msra.mxu0 %v540
    %542 = vmatprep.subr.mxu0 0.0
    %v543 = vand.u32 %v31, 4294901760
    %v544 = vsub.f32 %v31, %v543
    %v545 = vand.u32 %v544, 4294901760
    %546 = vmatpush1.msra.mxu0 %v545
    %547 = vmatprep.subr.mxu0 0.0
    %548 = vmatpush1.msra.mxu0 0.0
    %549 = vmatprep.subr.mxu0 0.0
    %550 = vmatpush1.msra.mxu0 0.0
    %551 = vmatprep.subr.mxu0 0.0
    %552 = vmatpush1.msra.mxu0 0.0
    %553 = vmatprep.subr.mxu0 0.0
    %554 = vmatpush1.msra.mxu0 0.0
    %555 = vmatprep.subr.mxu0 0.0
    %556 = vmatpush1.msra.mxu0 0.0
    %557 = vmatprep.subr.mxu0 0.0
    %558 = vmatpush1.msra.mxu0 0.0
    %559 = vmatprep.subr.mxu0 0.0
    %560 = vmatpush1.msra.mxu0 0.0
    %561 = vmatprep.subr.mxu0 0.0
    %562 = vmatpush1.msra.mxu0 0.0
    %563 = vmatprep.subr.mxu0 0.0
    %564 = vmatpush1.msra.mxu0 0.0
    %565 = vmatprep.subr.mxu0 0.0
    %566 = vmatpush1.msra.mxu0 0.0
    %567 = vmatprep.subr.mxu0 0.0
    %568 = vmatpush1.msra.mxu0 0.0
    %569 = vmatprep.subr.mxu0 0.0
    %570 = vmatpush1.msra.mxu0 0.0
    %571 = vmatprep.subr.mxu0 0.0
    %572 = vmatpush1.msra.mxu0 0.0
    %573 = vmatprep.subr.mxu0 0.0
    %574 = vmatpush1.msra.mxu0 0.0
    %575 = vmatprep.subr.mxu0 0.0
    %576 = vmatpush1.msra.mxu0 0.0
    %577 = vmatprep.subr.mxu0 0.0
    %578 = vmatpush1.msra.mxu0 0.0
    %579 = vmatprep.mubr.f32.mxu0 0.0
    %v580 = vand.u32 %v15, 4294901760
    %581 = vmatmul.mubr.f32.gmra.mrb[0].mxu0 %v580
    %v582 = vpop.f32.mrb[0].mxu0
    %v583 = vadd.f32 %v464, %v582
    %v584 = vpop.f32.mrb[0].mxu0
    %585 = vdwg.mxu0
    %586 = vmatprep.subr.mxu0 0.0
    %v587 = vand.u32 %v16, 4294901760
    %588 = vmatpush1.msra.mxu0 %v587
    %589 = vmatprep.subr.mxu0 0.0
    %v590 = vand.u32 %v17, 4294901760
    %591 = vmatpush1.msra.mxu0 %v590
    %592 = vmatprep.subr.mxu0 0.0
    %v593 = vand.u32 %v18, 4294901760
    %594 = vmatpush1.msra.mxu0 %v593
    %595 = vmatprep.subr.mxu0 0.0
    %v596 = vand.u32 %v19, 4294901760
    %597 = vmatpush1.msra.mxu0 %v596
    %598 = vmatprep.subr.mxu0 0.0
    %v599 = vand.u32 %v20, 4294901760
    %600 = vmatpush1.msra.mxu0 %v599
    %601 = vmatprep.subr.mxu0 0.0
    %v602 = vand.u32 %v21, 4294901760
    %603 = vmatpush1.msra.mxu0 %v602
    %604 = vmatprep.subr.mxu0 0.0
    %v605 = vand.u32 %v22, 4294901760
    %606 = vmatpush1.msra.mxu0 %v605
    %607 = vmatprep.subr.mxu0 0.0
    %v608 = vand.u32 %v23, 4294901760
    %609 = vmatpush1.msra.mxu0 %v608
    %610 = vmatprep.subr.mxu0 0.0
    %v611 = vand.u32 %v24, 4294901760
    %612 = vmatpush1.msra.mxu0 %v611
    %613 = vmatprep.subr.mxu0 0.0
    %v614 = vand.u32 %v25, 4294901760
    %615 = vmatpush1.msra.mxu0 %v614
    %616 = vmatprep.subr.mxu0 0.0
    %v617 = vand.u32 %v26, 4294901760
    %618 = vmatpush1.msra.mxu0 %v617
    %619 = vmatprep.subr.mxu0 0.0
    %v620 = vand.u32 %v27, 4294901760
    %621 = vmatpush1.msra.mxu0 %v620
    %622 = vmatprep.subr.mxu0 0.0
    %v623 = vand.u32 %v28, 4294901760
    %624 = vmatpush1.msra.mxu0 %v623
    %625 = vmatprep.subr.mxu0 0.0
    %v626 = vand.u32 %v29, 4294901760
    %627 = vmatpush1.msra.mxu0 %v626
    %628 = vmatprep.subr.mxu0 0.0
    %v629 = vand.u32 %v30, 4294901760
    %630 = vmatpush1.msra.mxu0 %v629
    %631 = vmatprep.subr.mxu0 0.0
    %v632 = vand.u32 %v31, 4294901760
    %633 = vmatpush1.msra.mxu0 %v632
    %634 = vmatprep.subr.mxu0 0.0
    %635 = vmatpush1.msra.mxu0 0.0
    %636 = vmatprep.subr.mxu0 0.0
    %637 = vmatpush1.msra.mxu0 0.0
    %638 = vmatprep.subr.mxu0 0.0
    %639 = vmatpush1.msra.mxu0 0.0
    %640 = vmatprep.subr.mxu0 0.0
    %641 = vmatpush1.msra.mxu0 0.0
    %642 = vmatprep.subr.mxu0 0.0
    %643 = vmatpush1.msra.mxu0 0.0
    %644 = vmatprep.subr.mxu0 0.0
    %645 = vmatpush1.msra.mxu0 0.0
    %646 = vmatprep.subr.mxu0 0.0
    %647 = vmatpush1.msra.mxu0 0.0
    %648 = vmatprep.subr.mxu0 0.0
    %649 = vmatpush1.msra.mxu0 0.0
    %650 = vmatprep.subr.mxu0 0.0
    %651 = vmatpush1.msra.mxu0 0.0
    %652 = vmatprep.subr.mxu0 0.0
    %653 = vmatpush1.msra.mxu0 0.0
    %654 = vmatprep.subr.mxu0 0.0
    %655 = vmatpush1.msra.mxu0 0.0
    %656 = vmatprep.subr.mxu0 0.0
    %657 = vmatpush1.msra.mxu0 0.0
    %658 = vmatprep.subr.mxu0 0.0
    %659 = vmatpush1.msra.mxu0 0.0
    %660 = vmatprep.subr.mxu0 0.0
    %661 = vmatpush1.msra.mxu0 0.0
    %662 = vmatprep.subr.mxu0 0.0
    %663 = vmatpush1.msra.mxu0 0.0
    %664 = vmatprep.subr.mxu0 0.0
    %665 = vmatpush1.msra.mxu0 0.0
    %666 = vmatprep.mubr.f32.mxu0 0.0
    %v667 = vand.u32 %v15, 4294901760
    %668 = vmatmul.mubr.f32.gmra.mrb[0].mxu0 %v667
    %v669 = vpop.f32.mrb[0].mxu0
    %v670 = vadd.f32 %v583, %v669
    %v671 = vpop.f32.mrb[0].mxu0
    %672 = vdwg.mxu0
    %v673 = vtanh.pop %v670
    %v674 = vld [vmem:[%s1] sm:$0xff]
    %v675 = vld [vmem:[%s1 + $0x8] sm:$0xff]
    %v676 = vld [vmem:[%s1 + $0x10] sm:$0xff]
    %v677 = vld [vmem:[%s1 + $0x18] sm:$0xff]
    %v678 = vld [vmem:[%s1 + $0x20] sm:$0xff]
    %v679 = vld [vmem:[%s1 + $0x28] sm:$0xff]
    %v680 = vld [vmem:[%s1 + $0x30] sm:$0xff]
    %v681 = vld [vmem:[%s1 + $0x38] sm:$0xff]
    %v682 = vld [vmem:[%s1 + $0x40] sm:$0xff]
    %v683 = vld [vmem:[%s1 + $0x48] sm:$0xff]
    %v684 = vld [vmem:[%s1 + $0x50] sm:$0xff]
    %v685 = vld [vmem:[%s1 + $0x58] sm:$0xff]
    %v686 = vld [vmem:[%s1 + $0x60] sm:$0xff]
    %v687 = vld [vmem:[%s1 + $0x68] sm:$0xff]
    %v688 = vld [vmem:[%s1 + $0x70] sm:$0xff]
    %v689 = vld [vmem:[%s1 + $0x78] sm:$0xff]
    %690 = vmatprep.subr.mxu0 0.0
    %v691 = vand.u32 %v674, 4294901760
    %692 = vmatpush1.msra.mxu0 %v691
    %693 = vmatprep.subr.mxu0 0.0
    %v694 = vand.u32 %v675, 4294901760
    %695 = vmatpush1.msra.mxu0 %v694
    %696 = vmatprep.subr.mxu0 0.0
    %v697 = vand.u32 %v676, 4294901760
    %698 = vmatpush1.msra.mxu0 %v697
    %699 = vmatprep.subr.mxu0 0.0
    %v700 = vand.u32 %v677, 4294901760
    %701 = vmatpush1.msra.mxu0 %v700
    %702 = vmatprep.subr.mxu0 0.0
    %v703 = vand.u32 %v678, 4294901760
    %704 = vmatpush1.msra.mxu0 %v703
    %705 = vmatprep.subr.mxu0 0.0
    %v706 = vand.u32 %v679, 4294901760
    %707 = vmatpush1.msra.mxu0 %v706
    %708 = vmatprep.subr.mxu0 0.0
    %v709 = vand.u32 %v680, 4294901760
    %710 = vmatpush1.msra.mxu0 %v709
    %711 = vmatprep.subr.mxu0 0.0
    %v712 = vand.u32 %v681, 4294901760
    %713 = vmatpush1.msra.mxu0 %v712
    %714 = vmatprep.subr.mxu0 0.0
    %v715 = vand.u32 %v682, 4294901760
    %716 = vmatpush1.msra.mxu0 %v715
    %717 = vmatprep.subr.mxu0 0.0
    %v718 = vand.u32 %v683, 4294901760
    %719 = vmatpush1.msra.mxu0 %v718
    %720 = vmatprep.subr.mxu0 0.0
    %v721 = vand.u32 %v684, 4294901760
    %722 = vmatpush1.msra.mxu0 %v721
    %723 = vmatprep.subr.mxu0 0.0
    %v724 = vand.u32 %v685, 4294901760
    %725 = vmatpush1.msra.mxu0 %v724
    %726 = vmatprep.subr.mxu0 0.0
    %v727 = vand.u32 %v686, 4294901760
    %728 = vmatpush1.msra.mxu0 %v727
    %729 = vmatprep.subr.mxu0 0.0
    %v730 = vand.u32 %v687, 4294901760
    %731 = vmatpush1.msra.mxu0 %v730
    %732 = vmatprep.subr.mxu0 0.0
    %v733 = vand.u32 %v688, 4294901760
    %734 = vmatpush1.msra.mxu0 %v733
    %735 = vmatprep.subr.mxu0 0.0
    %v736 = vand.u32 %v689, 4294901760
    %737 = vmatpush1.msra.mxu0 %v736
    %738 = vmatprep.subr.mxu0 0.0
    %739 = vmatpush1.msra.mxu0 0.0
    %740 = vmatprep.subr.mxu0 0.0
    %741 = vmatpush1.msra.mxu0 0.0
    %742 = vmatprep.subr.mxu0 0.0
    %743 = vmatpush1.msra.mxu0 0.0
    %744 = vmatprep.subr.mxu0 0.0
    %745 = vmatpush1.msra.mxu0 0.0
    %746 = vmatprep.subr.mxu0 0.0
    %747 = vmatpush1.msra.mxu0 0.0
    %748 = vmatprep.subr.mxu0 0.0
    %749 = vmatpush1.msra.mxu0 0.0
    %750 = vmatprep.subr.mxu0 0.0
    %751 = vmatpush1.msra.mxu0 0.0
    %752 = vmatprep.subr.mxu0 0.0
    %753 = vmatpush1.msra.mxu0 0.0
    %754 = vmatprep.subr.mxu0 0.0
    %755 = vmatpush1.msra.mxu0 0.0
    %756 = vmatprep.subr.mxu0 0.0
    %757 = vmatpush1.msra.mxu0 0.0
    %758 = vmatprep.subr.mxu0 0.0
    %759 = vmatpush1.msra.mxu0 0.0
    %760 = vmatprep.subr.mxu0 0.0
    %761 = vmatpush1.msra.mxu0 0.0
    %762 = vmatprep.subr.mxu0 0.0
    %763 = vmatpush1.msra.mxu0 0.0
    %764 = vmatprep.subr.mxu0 0.0
    %765 = vmatpush1.msra.mxu0 0.0
    %766 = vmatprep.subr.mxu0 0.0
    %767 = vmatpush1.msra.mxu0 0.0
    %768 = vmatprep.subr.mxu0 0.0
    %769 = vmatpush1.msra.mxu0 0.0
    %770 = vmatprep.mubr.f32.mxu0 0.0
    %v771 = vand.u32 %v673, 4294901760
    %v772 = vsub.f32 %v673, %v771
    %v773 = vand.u32 %v772, 4294901760
    %v774 = vsub.f32 %v772, %v773
    %v775 = vand.u32 %v774, 4294901760
    %776 = vmatmul.mubr.f32.gmra.mrb[0].mxu0 %v775
    %v777 = vpop.f32.mrb[0].mxu0
    %v778 = vadd.f32 0.0, %v777
    %v779 = vpop.f32.mrb[0].mxu0
    %780 = vdwg.mxu0
    %781 = vmatprep.subr.mxu0 0.0
    %v782 = vand.u32 %v674, 4294901760
    %v783 = vsub.f32 %v674, %v782
    %v784 = vand.u32 %v783, 4294901760
    %v785 = vsub.f32 %v783, %v784
    %v786 = vand.u32 %v785, 4294901760
    %787 = vmatpush1.msra.mxu0 %v786
    %788 = vmatprep.subr.mxu0 0.0
    %v789 = vand.u32 %v675, 4294901760
    %v790 = vsub.f32 %v675, %v789
    %v791 = vand.u32 %v790, 4294901760
    %v792 = vsub.f32 %v790, %v791
    %v793 = vand.u32 %v792, 4294901760
    %794 = vmatpush1.msra.mxu0 %v793
    %795 = vmatprep.subr.mxu0 0.0
    %v796 = vand.u32 %v676, 4294901760
    %v797 = vsub.f32 %v676, %v796
    %v798 = vand.u32 %v797, 4294901760
    %v799 = vsub.f32 %v797, %v798
    %v800 = vand.u32 %v799, 4294901760
    %801 = vmatpush1.msra.mxu0 %v800
    %802 = vmatprep.subr.mxu0 0.0
    %v803 = vand.u32 %v677, 4294901760
    %v804 = vsub.f32 %v677, %v803
    %v805 = vand.u32 %v804, 4294901760
    %v806 = vsub.f32 %v804, %v805
    %v807 = vand.u32 %v806, 4294901760
    %808 = vmatpush1.msra.mxu0 %v807
    %809 = vmatprep.subr.mxu0 0.0
    %v810 = vand.u32 %v678, 4294901760
    %v811 = vsub.f32 %v678, %v810
    %v812 = vand.u32 %v811, 4294901760
    %v813 = vsub.f32 %v811, %v812
    %v814 = vand.u32 %v813, 4294901760
    %815 = vmatpush1.msra.mxu0 %v814
    %816 = vmatprep.subr.mxu0 0.0
    %v817 = vand.u32 %v679, 4294901760
    %v818 = vsub.f32 %v679, %v817
    %v819 = vand.u32 %v818, 4294901760
    %v820 = vsub.f32 %v818, %v819
    %v821 = vand.u32 %v820, 4294901760
    %822 = vmatpush1.msra.mxu0 %v821
    %823 = vmatprep.subr.mxu0 0.0
    %v824 = vand.u32 %v680, 4294901760
    %v825 = vsub.f32 %v680, %v824
    %v826 = vand.u32 %v825, 4294901760
    %v827 = vsub.f32 %v825, %v826
    %v828 = vand.u32 %v827, 4294901760
    %829 = vmatpush1.msra.mxu0 %v828
    %830 = vmatprep.subr.mxu0 0.0
    %v831 = vand.u32 %v681, 4294901760
    %v832 = vsub.f32 %v681, %v831
    %v833 = vand.u32 %v832, 4294901760
    %v834 = vsub.f32 %v832, %v833
    %v835 = vand.u32 %v834, 4294901760
    %836 = vmatpush1.msra.mxu0 %v835
    %837 = vmatprep.subr.mxu0 0.0
    %v838 = vand.u32 %v682, 4294901760
    %v839 = vsub.f32 %v682, %v838
    %v840 = vand.u32 %v839, 4294901760
    %v841 = vsub.f32 %v839, %v840
    %v842 = vand.u32 %v841, 4294901760
    %843 = vmatpush1.msra.mxu0 %v842
    %844 = vmatprep.subr.mxu0 0.0
    %v845 = vand.u32 %v683, 4294901760
    %v846 = vsub.f32 %v683, %v845
    %v847 = vand.u32 %v846, 4294901760
    %v848 = vsub.f32 %v846, %v847
    %v849 = vand.u32 %v848, 4294901760
    %850 = vmatpush1.msra.mxu0 %v849
    %851 = vmatprep.subr.mxu0 0.0
    %v852 = vand.u32 %v684, 4294901760
    %v853 = vsub.f32 %v684, %v852
    %v854 = vand.u32 %v853, 4294901760
    %v855 = vsub.f32 %v853, %v854
    %v856 = vand.u32 %v855, 4294901760
    %857 = vmatpush1.msra.mxu0 %v856
    %858 = vmatprep.subr.mxu0 0.0
    %v859 = vand.u32 %v685, 4294901760
    %v860 = vsub.f32 %v685, %v859
    %v861 = vand.u32 %v860, 4294901760
    %v862 = vsub.f32 %v860, %v861
    %v863 = vand.u32 %v862, 4294901760
    %864 = vmatpush1.msra.mxu0 %v863
    %865 = vmatprep.subr.mxu0 0.0
    %v866 = vand.u32 %v686, 4294901760
    %v867 = vsub.f32 %v686, %v866
    %v868 = vand.u32 %v867, 4294901760
    %v869 = vsub.f32 %v867, %v868
    %v870 = vand.u32 %v869, 4294901760
    %871 = vmatpush1.msra.mxu0 %v870
    %872 = vmatprep.subr.mxu0 0.0
    %v873 = vand.u32 %v687, 4294901760
    %v874 = vsub.f32 %v687, %v873
    %v875 = vand.u32 %v874, 4294901760
    %v876 = vsub.f32 %v874, %v875
    %v877 = vand.u32 %v876, 4294901760
    %878 = vmatpush1.msra.mxu0 %v877
    %879 = vmatprep.subr.mxu0 0.0
    %v880 = vand.u32 %v688, 4294901760
    %v881 = vsub.f32 %v688, %v880
    %v882 = vand.u32 %v881, 4294901760
    %v883 = vsub.f32 %v881, %v882
    %v884 = vand.u32 %v883, 4294901760
    %885 = vmatpush1.msra.mxu0 %v884
    %886 = vmatprep.subr.mxu0 0.0
    %v887 = vand.u32 %v689, 4294901760
    %v888 = vsub.f32 %v689, %v887
    %v889 = vand.u32 %v888, 4294901760
    %v890 = vsub.f32 %v888, %v889
    %v891 = vand.u32 %v890, 4294901760
    %892 = vmatpush1.msra.mxu0 %v891
    %893 = vmatprep.subr.mxu0 0.0
    %894 = vmatpush1.msra.mxu0 0.0
    %895 = vmatprep.subr.mxu0 0.0
    %896 = vmatpush1.msra.mxu0 0.0
    %897 = vmatprep.subr.mxu0 0.0
    %898 = vmatpush1.msra.mxu0 0.0
    %899 = vmatprep.subr.mxu0 0.0
    %900 = vmatpush1.msra.mxu0 0.0
    %901 = vmatprep.subr.mxu0 0.0
    %902 = vmatpush1.msra.mxu0 0.0
    %903 = vmatprep.subr.mxu0 0.0
    %904 = vmatpush1.msra.mxu0 0.0
    %905 = vmatprep.subr.mxu0 0.0
    %906 = vmatpush1.msra.mxu0 0.0
    %907 = vmatprep.subr.mxu0 0.0
    %908 = vmatpush1.msra.mxu0 0.0
    %909 = vmatprep.subr.mxu0 0.0
    %910 = vmatpush1.msra.mxu0 0.0
    %911 = vmatprep.subr.mxu0 0.0
    %912 = vmatpush1.msra.mxu0 0.0
    %913 = vmatprep.subr.mxu0 0.0
    %914 = vmatpush1.msra.mxu0 0.0
    %915 = vmatprep.subr.mxu0 0.0
    %916 = vmatpush1.msra.mxu0 0.0
    %917 = vmatprep.subr.mxu0 0.0
    %918 = vmatpush1.msra.mxu0 0.0
    %919 = vmatprep.subr.mxu0 0.0
    %920 = vmatpush1.msra.mxu0 0.0
    %921 = vmatprep.subr.mxu0 0.0
    %922 = vmatpush1.msra.mxu0 0.0
    %923 = vmatprep.subr.mxu0 0.0
    %924 = vmatpush1.msra.mxu0 0.0
    %925 = vmatprep.mubr.f32.mxu0 0.0
    %v926 = vand.u32 %v673, 4294901760
    %927 = vmatmul.mubr.f32.gmra.mrb[0].mxu0 %v926
    %v928 = vpop.f32.mrb[0].mxu0
    %v929 = vadd.f32 %v778, %v928
    %v930 = vpop.f32.mrb[0].mxu0
    %931 = vdwg.mxu0
    %932 = vmatprep.subr.mxu0 0.0
    %v933 = vand.u32 %v674, 4294901760
    %v934 = vsub.f32 %v674, %v933
    %935 = vmatpush1.msra.mxu0 %v934
    %936 = vmatprep.subr.mxu0 0.0
    %v937 = vand.u32 %v675, 4294901760
    %v938 = vsub.f32 %v675, %v937
    %939 = vmatpush1.msra.mxu0 %v938
    %940 = vmatprep.subr.mxu0 0.0
    %v941 = vand.u32 %v676, 4294901760
    %v942 = vsub.f32 %v676, %v941
    %943 = vmatpush1.msra.mxu0 %v942
    %944 = vmatprep.subr.mxu0 0.0
    %v945 = vand.u32 %v677, 4294901760
    %v946 = vsub.f32 %v677, %v945
    %947 = vmatpush1.msra.mxu0 %v946
    %948 = vmatprep.subr.mxu0 0.0
    %v949 = vand.u32 %v678, 4294901760
    %v950 = vsub.f32 %v678, %v949
    %951 = vmatpush1.msra.mxu0 %v950
    %952 = vmatprep.subr.mxu0 0.0
    %v953 = vand.u32 %v679, 4294901760
    %v954 = vsub.f32 %v679, %v953
    %955 = vmatpush1.msra.mxu0 %v954
    %956 = vmatprep.subr.mxu0 0.0
    %v957 = vand.u32 %v680, 4294901760
    %v958 = vsub.f32 %v680, %v957
    %959 = vmatpush1.msra.mxu0 %v958
    %960 = vmatprep.subr.mxu0 0.0
    %v961 = vand.u32 %v681, 4294901760
    %v962 = vsub.f32 %v681, %v961
    %963 = vmatpush1.msra.mxu0 %v962
    %964 = vmatprep.subr.mxu0 0.0
    %v965 = vand.u32 %v682, 4294901760
    %v966 = vsub.f32 %v682, %v965
    %967 = vmatpush1.msra.mxu0 %v966
    %968 = vmatprep.subr.mxu0 0.0
    %v969 = vand.u32 %v683, 4294901760
    %v970 = vsub.f32 %v683, %v969
    %971 = vmatpush1.msra.mxu0 %v970
    %972 = vmatprep.subr.mxu0 0.0
    %v973 = vand.u32 %v684, 4294901760
    %v974 = vsub.f32 %v684, %v973
    %975 = vmatpush1.msra.mxu0 %v974
    %976 = vmatprep.subr.mxu0 0.0
    %v977 = vand.u32 %v685, 4294901760
    %v978 = vsub.f32 %v685, %v977
    %979 = vmatpush1.msra.mxu0 %v978
    %980 = vmatprep.subr.mxu0 0.0
    %v981 = vand.u32 %v686, 4294901760
    %v982 = vsub.f32 %v686, %v981
    %983 = vmatpush1.msra.mxu0 %v982
    %984 = vmatprep.subr.mxu0 0.0
    %v985 = vand.u32 %v687, 4294901760
    %v986 = vsub.f32 %v687, %v985
    %987 = vmatpush1.msra.mxu0 %v986
    %988 = vmatprep.subr.mxu0 0.0
    %v989 = vand.u32 %v688, 4294901760
    %v990 = vsub.f32 %v688, %v989
    %991 = vmatpush1.msra.mxu0 %v990
    %992 = vmatprep.subr.mxu0 0.0
    %v993 = vand.u32 %v689, 4294901760
    %v994 = vsub.f32 %v689, %v993
    %995 = vmatpush1.msra.mxu0 %v994
    %996 = vmatprep.subr.mxu0 0.0
    %997 = vmatpush1.msra.mxu0 0.0
    %998 = vmatprep.subr.mxu0 0.0
    %999 = vmatpush1.msra.mxu0 0.0
    %1000 = vmatprep.subr.mxu0 0.0
    %1001 = vmatpush1.msra.mxu0 0.0
    %1002 = vmatprep.subr.mxu0 0.0
    %1003 = vmatpush1.msra.mxu0 0.0
    %1004 = vmatprep.subr.mxu0 0.0
    %1005 = vmatpush1.msra.mxu0 0.0
    %1006 = vmatprep.subr.mxu0 0.0
    %1007 = vmatpush1.msra.mxu0 0.0
    %1008 = vmatprep.subr.mxu0 0.0
    %1009 = vmatpush1.msra.mxu0 0.0
    %1010 = vmatprep.subr.mxu0 0.0
    %1011 = vmatpush1.msra.mxu0 0.0
    %1012 = vmatprep.subr.mxu0 0.0
    %1013 = vmatpush1.msra.mxu0 0.0
    %1014 = vmatprep.subr.mxu0 0.0
    %1015 = vmatpush1.msra.mxu0 0.0
    %1016 = vmatprep.subr.mxu0 0.0
    %1017 = vmatpush1.msra.mxu0 0.0
    %1018 = vmatprep.subr.mxu0 0.0
    %1019 = vmatpush1.msra.mxu0 0.0
    %1020 = vmatprep.subr.mxu0 0.0
    %1021 = vmatpush1.msra.mxu0 0.0
    %1022 = vmatprep.subr.mxu0 0.0
    %1023 = vmatpush1.msra.mxu0 0.0
    %1024 = vmatprep.subr.mxu0 0.0
    %1025 = vmatpush1.msra.mxu0 0.0
    %1026 = vmatprep.subr.mxu0 0.0
    %1027 = vmatpush1.msra.mxu0 0.0
    %1028 = vmatprep.mubr.f32.mxu0 0.0
    %v1029 = vand.u32 %v673, 4294901760
    %v1030 = vsub.f32 %v673, %v1029
    %1031 = vmatmul.mubr.f32.gmra.mrb[0].mxu0 %v1030
    %v1032 = vpop.f32.mrb[0].mxu0
    %v1033 = vadd.f32 %v929, %v1032
    %v1034 = vpop.f32.mrb[0].mxu0
    %1035 = vdwg.mxu0
    %1036 = vmatprep.subr.mxu0 0.0
    %v1037 = vand.u32 %v674, 4294901760
    %1038 = vmatpush1.msra.mxu0 %v1037
    %1039 = vmatprep.subr.mxu0 0.0
    %v1040 = vand.u32 %v675, 4294901760
    %1041 = vmatpush1.msra.mxu0 %v1040
    %1042 = vmatprep.subr.mxu0 0.0
    %v1043 = vand.u32 %v676, 4294901760
    %1044 = vmatpush1.msra.mxu0 %v1043
    %1045 = vmatprep.subr.mxu0 0.0
    %v1046 = vand.u32 %v677, 4294901760
    %1047 = vmatpush1.msra.mxu0 %v1046
    %1048 = vmatprep.subr.mxu0 0.0
    %v1049 = vand.u32 %v678, 4294901760
    %1050 = vmatpush1.msra.mxu0 %v1049
    %1051 = vmatprep.subr.mxu0 0.0
    %v1052 = vand.u32 %v679, 4294901760
    %1053 = vmatpush1.msra.mxu0 %v1052
    %1054 = vmatprep.subr.mxu0 0.0
    %v1055 = vand.u32 %v680, 4294901760
    %1056 = vmatpush1.msra.mxu0 %v1055
    %1057 = vmatprep.subr.mxu0 0.0
    %v1058 = vand.u32 %v681, 4294901760
    %1059 = vmatpush1.msra.mxu0 %v1058
    %1060 = vmatprep.subr.mxu0 0.0
    %v1061 = vand.u32 %v682, 4294901760
    %1062 = vmatpush1.msra.mxu0 %v1061
    %1063 = vmatprep.subr.mxu0 0.0
    %v1064 = vand.u32 %v683, 4294901760
    %1065 = vmatpush1.msra.mxu0 %v1064
    %1066 = vmatprep.subr.mxu0 0.0
    %v1067 = vand.u32 %v684, 4294901760
    %1068 = vmatpush1.msra.mxu0 %v1067
    %1069 = vmatprep.subr.mxu0 0.0
    %v1070 = vand.u32 %v685, 4294901760
    %1071 = vmatpush1.msra.mxu0 %v1070
    %1072 = vmatprep.subr.mxu0 0.0
    %v1073 = vand.u32 %v686, 4294901760
    %1074 = vmatpush1.msra.mxu0 %v1073
    %1075 = vmatprep.subr.mxu0 0.0
    %v1076 = vand.u32 %v687, 4294901760
    %1077 = vmatpush1.msra.mxu0 %v1076
    %1078 = vmatprep.subr.mxu0 0.0
    %v1079 = vand.u32 %v688, 4294901760
    %1080 = vmatpush1.msra.mxu0 %v1079
    %1081 = vmatprep.subr.mxu0 0.0
    %v1082 = vand.u32 %v689, 4294901760
    %1083 = vmatpush1.msra.mxu0 %v1082
    %1084 = vmatprep.subr.mxu0 0.0
    %1085 = vmatpush1.msra.mxu0 0.0
    %1086 = vmatprep.subr.mxu0 0.0
    %1087 = vmatpush1.msra.mxu0 0.0
    %1088 = vmatprep.subr.mxu0 0.0
    %1089 = vmatpush1.msra.mxu0 0.0
    %1090 = vmatprep.subr.mxu0 0.0
    %1091 = vmatpush1.msra.mxu0 0.0
    %1092 = vmatprep.subr.mxu0 0.0
    %1093 = vmatpush1.msra.mxu0 0.0
    %1094 = vmatprep.subr.mxu0 0.0
    %1095 = vmatpush1.msra.mxu0 0.0
    %1096 = vmatprep.subr.mxu0 0.0
    %1097 = vmatpush1.msra.mxu0 0.0
    %1098 = vmatprep.subr.mxu0 0.0
    %1099 = vmatpush1.msra.mxu0 0.0
    %1100 = vmatprep.subr.mxu0 0.0
    %1101 = vmatpush1.msra.mxu0 0.0
    %1102 = vmatprep.subr.mxu0 0.0
    %1103 = vmatpush1.msra.mxu0 0.0
    %1104 = vmatprep.subr.mxu0 0.0
    %1105 = vmatpush1.msra.mxu0 0.0
    %1106 = vmatprep.subr.mxu0 0.0
    %1107 = vmatpush1.msra.mxu0 0.0
    %1108 = vmatprep.subr.mxu0 0.0
    %1109 = vmatpush1.msra.mxu0 0.0
    %1110 = vmatprep.subr.mxu0 0.0
    %1111 = vmatpush1.msra.mxu0 0.0
    %1112 = vmatprep.subr.mxu0 0.0
    %1113 = vmatpush1.msra.mxu0 0.0
    %1114 = vmatprep.subr.mxu0 0.0
    %1115 = vmatpush1.msra.mxu0 0.0
    %1116 = vmatprep.mubr.f32.mxu0 0.0
    %v1117 = vand.u32 %v673, 4294901760
    %v1118 = vsub.f32 %v673, %v1117
    %v1119 = vand.u32 %v1118, 4294901760
    %1120 = vmatmul.mubr.f32.gmra.mrb[0].mxu0 %v1119
    %v1121 = vpop.f32.mrb[0].mxu0
    %v1122 = vadd.f32 %v1033, %v1121
    %v1123 = vpop.f32.mrb[0].mxu0
    %1124 = vdwg.mxu0
    %1125 = vmatprep.subr.mxu0 0.0
    %v1126 = vand.u32 %v674, 4294901760
    %v1127 = vsub.f32 %v674, %v1126
    %v1128 = vand.u32 %v1127, 4294901760
    %1129 = vmatpush1.msra.mxu0 %v1128
    %1130 = vmatprep.subr.mxu0 0.0
    %v1131 = vand.u32 %v675, 4294901760
    %v1132 = vsub.f32 %v675, %v1131
    %v1133 = vand.u32 %v1132, 4294901760
    %1134 = vmatpush1.msra.mxu0 %v1133
    %1135 = vmatprep.subr.mxu0 0.0
    %v1136 = vand.u32 %v676, 4294901760
    %v1137 = vsub.f32 %v676, %v1136
    %v1138 = vand.u32 %v1137, 4294901760
    %1139 = vmatpush1.msra.mxu0 %v1138
    %1140 = vmatprep.subr.mxu0 0.0
    %v1141 = vand.u32 %v677, 4294901760
    %v1142 = vsub.f32 %v677, %v1141
    %v1143 = vand.u32 %v1142, 4294901760
    %1144 = vmatpush1.msra.mxu0 %v1143
    %1145 = vmatprep.subr.mxu0 0.0
    %v1146 = vand.u32 %v678, 4294901760
    %v1147 = vsub.f32 %v678, %v1146
    %v1148 = vand.u32 %v1147, 4294901760
    %1149 = vmatpush1.msra.mxu0 %v1148
    %1150 = vmatprep.subr.mxu0 0.0
    %v1151 = vand.u32 %v679, 4294901760
    %v1152 = vsub.f32 %v679, %v1151
    %v1153 = vand.u32 %v1152, 4294901760
    %1154 = vmatpush1.msra.mxu0 %v1153
    %1155 = vmatprep.subr.mxu0 0.0
    %v1156 = vand.u32 %v680, 4294901760
    %v1157 = vsub.f32 %v680, %v1156
    %v1158 = vand.u32 %v1157, 4294901760
    %1159 = vmatpush1.msra.mxu0 %v1158
    %1160 = vmatprep.subr.mxu0 0.0
    %v1161 = vand.u32 %v681, 4294901760
    %v1162 = vsub.f32 %v681, %v1161
    %v1163 = vand.u32 %v1162, 4294901760
    %1164 = vmatpush1.msra.mxu0 %v1163
    %1165 = vmatprep.subr.mxu0 0.0
    %v1166 = vand.u32 %v682, 4294901760
    %v1167 = vsub.f32 %v682, %v1166
    %v1168 = vand.u32 %v1167, 4294901760
    %1169 = vmatpush1.msra.mxu0 %v1168
    %1170 = vmatprep.subr.mxu0 0.0
    %v1171 = vand.u32 %v683, 4294901760
    %v1172 = vsub.f32 %v683, %v1171
    %v1173 = vand.u32 %v1172, 4294901760
    %1174 = vmatpush1.msra.mxu0 %v1173
    %1175 = vmatprep.subr.mxu0 0.0
    %v1176 = vand.u32 %v684, 4294901760
    %v1177 = vsub.f32 %v684, %v1176
    %v1178 = vand.u32 %v1177, 4294901760
    %1179 = vmatpush1.msra.mxu0 %v1178
    %1180 = vmatprep.subr.mxu0 0.0
    %v1181 = vand.u32 %v685, 4294901760
    %v1182 = vsub.f32 %v685, %v1181
    %v1183 = vand.u32 %v1182, 4294901760
    %1184 = vmatpush1.msra.mxu0 %v1183
    %1185 = vmatprep.subr.mxu0 0.0
    %v1186 = vand.u32 %v686, 4294901760
    %v1187 = vsub.f32 %v686, %v1186
    %v1188 = vand.u32 %v1187, 4294901760
    %1189 = vmatpush1.msra.mxu0 %v1188
    %1190 = vmatprep.subr.mxu0 0.0
    %v1191 = vand.u32 %v687, 4294901760
    %v1192 = vsub.f32 %v687, %v1191
    %v1193 = vand.u32 %v1192, 4294901760
    %1194 = vmatpush1.msra.mxu0 %v1193
    %1195 = vmatprep.subr.mxu0 0.0
    %v1196 = vand.u32 %v688, 4294901760
    %v1197 = vsub.f32 %v688, %v1196
    %v1198 = vand.u32 %v1197, 4294901760
    %1199 = vmatpush1.msra.mxu0 %v1198
    %1200 = vmatprep.subr.mxu0 0.0
    %v1201 = vand.u32 %v689, 4294901760
    %v1202 = vsub.f32 %v689, %v1201
    %v1203 = vand.u32 %v1202, 4294901760
    %1204 = vmatpush1.msra.mxu0 %v1203
    %1205 = vmatprep.subr.mxu0 0.0
    %1206 = vmatpush1.msra.mxu0 0.0
    %1207 = vmatprep.subr.mxu0 0.0
    %1208 = vmatpush1.msra.mxu0 0.0
    %1209 = vmatprep.subr.mxu0 0.0
    %1210 = vmatpush1.msra.mxu0 0.0
    %1211 = vmatprep.subr.mxu0 0.0
    %1212 = vmatpush1.msra.mxu0 0.0
    %1213 = vmatprep.subr.mxu0 0.0
    %1214 = vmatpush1.msra.mxu0 0.0
    %1215 = vmatprep.subr.mxu0 0.0
    %1216 = vmatpush1.msra.mxu0 0.0
    %1217 = vmatprep.subr.mxu0 0.0
    %1218 = vmatpush1.msra.mxu0 0.0
    %1219 = vmatprep.subr.mxu0 0.0
    %1220 = vmatpush1.msra.mxu0 0.0
    %1221 = vmatprep.subr.mxu0 0.0
    %1222 = vmatpush1.msra.mxu0 0.0
    %1223 = vmatprep.subr.mxu0 0.0
    %1224 = vmatpush1.msra.mxu0 0.0
    %1225 = vmatprep.subr.mxu0 0.0
    %1226 = vmatpush1.msra.mxu0 0.0
    %1227 = vmatprep.subr.mxu0 0.0
    %1228 = vmatpush1.msra.mxu0 0.0
    %1229 = vmatprep.subr.mxu0 0.0
    %1230 = vmatpush1.msra.mxu0 0.0
    %1231 = vmatprep.subr.mxu0 0.0
    %1232 = vmatpush1.msra.mxu0 0.0
    %1233 = vmatprep.subr.mxu0 0.0
    %1234 = vmatpush1.msra.mxu0 0.0
    %1235 = vmatprep.subr.mxu0 0.0
    %1236 = vmatpush1.msra.mxu0 0.0
    %1237 = vmatprep.mubr.f32.mxu0 0.0
    %v1238 = vand.u32 %v673, 4294901760
    %1239 = vmatmul.mubr.f32.gmra.mrb[0].mxu0 %v1238
    %v1240 = vpop.f32.mrb[0].mxu0
    %v1241 = vadd.f32 %v1122, %v1240
    %v1242 = vpop.f32.mrb[0].mxu0
    %1243 = vdwg.mxu0
    %1244 = vmatprep.subr.mxu0 0.0
    %v1245 = vand.u32 %v674, 4294901760
    %1246 = vmatpush1.msra.mxu0 %v1245
    %1247 = vmatprep.subr.mxu0 0.0
    %v1248 = vand.u32 %v675, 4294901760
    %1249 = vmatpush1.msra.mxu0 %v1248
    %1250 = vmatprep.subr.mxu0 0.0
    %v1251 = vand.u32 %v676, 4294901760
    %1252 = vmatpush1.msra.mxu0 %v1251
    %1253 = vmatprep.subr.mxu0 0.0
    %v1254 = vand.u32 %v677, 4294901760
    %1255 = vmatpush1.msra.mxu0 %v1254
    %1256 = vmatprep.subr.mxu0 0.0
    %v1257 = vand.u32 %v678, 4294901760
    %1258 = vmatpush1.msra.mxu0 %v1257
    %1259 = vmatprep.subr.mxu0 0.0
    %v1260 = vand.u32 %v679, 4294901760
    %1261 = vmatpush1.msra.mxu0 %v1260
    %1262 = vmatprep.subr.mxu0 0.0
    %v1263 = vand.u32 %v680, 4294901760
    %1264 = vmatpush1.msra.mxu0 %v1263
    %1265 = vmatprep.subr.mxu0 0.0
    %v1266 = vand.u32 %v681, 4294901760
    %1267 = vmatpush1.msra.mxu0 %v1266
    %1268 = vmatprep.subr.mxu0 0.0
    %v1269 = vand.u32 %v682, 4294901760
    %1270 = vmatpush1.msra.mxu0 %v1269
    %1271 = vmatprep.subr.mxu0 0.0
    %v1272 = vand.u32 %v683, 4294901760
    %1273 = vmatpush1.msra.mxu0 %v1272
    %1274 = vmatprep.subr.mxu0 0.0
    %v1275 = vand.u32 %v684, 4294901760
    %1276 = vmatpush1.msra.mxu0 %v1275
    %1277 = vmatprep.subr.mxu0 0.0
    %v1278 = vand.u32 %v685, 4294901760
    %1279 = vmatpush1.msra.mxu0 %v1278
    %1280 = vmatprep.subr.mxu0 0.0
    %v1281 = vand.u32 %v686, 4294901760
    %1282 = vmatpush1.msra.mxu0 %v1281
    %1283 = vmatprep.subr.mxu0 0.0
    %v1284 = vand.u32 %v687, 4294901760
    %1285 = vmatpush1.msra.mxu0 %v1284
    %1286 = vmatprep.subr.mxu0 0.0
    %v1287 = vand.u32 %v688, 4294901760
    %1288 = vmatpush1.msra.mxu0 %v1287
    %1289 = vmatprep.subr.mxu0 0.0
    %v1290 = vand.u32 %v689, 4294901760
    %1291 = vmatpush1.msra.mxu0 %v1290
    %1292 = vmatprep.subr.mxu0 0.0
    %1293 = vmatpush1.msra.mxu0 0.0
    %1294 = vmatprep.subr.mxu0 0.0
    %1295 = vmatpush1.msra.mxu0 0.0
    %1296 = vmatprep.subr.mxu0 0.0
    %1297 = vmatpush1.msra.mxu0 0.0
    %1298 = vmatprep.subr.mxu0 0.0
    %1299 = vmatpush1.msra.mxu0 0.0
    %1300 = vmatprep.subr.mxu0 0.0
    %1301 = vmatpush1.msra.mxu0 0.0
    %1302 = vmatprep.subr.mxu0 0.0
    %1303 = vmatpush1.msra.mxu0 0.0
    %1304 = vmatprep.subr.mxu0 0.0
    %1305 = vmatpush1.msra.mxu0 0.0
    %1306 = vmatprep.subr.mxu0 0.0
    %1307 = vmatpush1.msra.mxu0 0.0
    %1308 = vmatprep.subr.mxu0 0.0
    %1309 = vmatpush1.msra.mxu0 0.0
    %1310 = vmatprep.subr.mxu0 0.0
    %1311 = vmatpush1.msra.mxu0 0.0
    %1312 = vmatprep.subr.mxu0 0.0
    %1313 = vmatpush1.msra.mxu0 0.0
    %1314 = vmatprep.subr.mxu0 0.0
    %1315 = vmatpush1.msra.mxu0 0.0
    %1316 = vmatprep.subr.mxu0 0.0
    %1317 = vmatpush1.msra.mxu0 0.0
    %1318 = vmatprep.subr.mxu0 0.0
    %1319 = vmatpush1.msra.mxu0 0.0
    %1320 = vmatprep.subr.mxu0 0.0
    %1321 = vmatpush1.msra.mxu0 0.0
    %1322 = vmatprep.subr.mxu0 0.0
    %1323 = vmatpush1.msra.mxu0 0.0
    %1324 = vmatprep.mubr.f32.mxu0 0.0
    %v1325 = vand.u32 %v673, 4294901760
    %1326 = vmatmul.mubr.f32.gmra.mrb[0].mxu0 %v1325
    %v1327 = vpop.f32.mrb[0].mxu0
    %v1328 = vadd.f32 %v1241, %v1327
    %v1329 = vpop.f32.mrb[0].mxu0
    %1330 = vdwg.mxu0
    %v1331 = vtanh.pop %v1328
    %vm1332 = vcmask 261120
    %1333 = vst.msk [vmem:[#allocation2] sm:$0xff] %vm1332, %v1331
    // Predicated region
    $region14: #{tpu_custom_call.1} parent=1 // pred_check
      _
    $region15: #{tpu_custom_call.1} parent=1 // pred_check_branch
      %1335 = sbr.rel (0) target = $region17
    $region16: #{tpu_custom_call.1} parent=1 // pred_region
      %s1337 = ssub.s32 128, 128
      %1338 = vsyncadd [#allocation3], %s1337
      %s1340 = sshll.u32 [#allocation2], 4
      %s1341 = int_to_ptr.vmem [resolvable:$true] %s1340
      %1343 = dma.vmem_to_hbm [thread:$0]  %s1341, 128, %s3, [#allocation3]
    $region17: #{tpu_custom_call.1} parent=1 // pred_fallthru
      _
    // Predicated region
    $region18: #{tpu_custom_call.1} parent=1 // pred_check
      _
    $region19: #{tpu_custom_call.1} parent=1 // pred_check_branch
      %1345 = sbr.rel (0) target = $region21
    $region20: #{tpu_custom_call.1} parent=1 // pred_region
      %1346 = dma.done [#allocation3], 128
    $region21: #{tpu_custom_call.1} parent=1 // pred_fallthru
      _
    %1347 = vsyncpa [#allocation3], 1

</llo_original>
